<compile_context>
chip_gen: v5e
topology: v5e:2x2
jax: 0.10.0
libtpu: 0.0.40
codegen_flags: <defaults>
</compile_context>

<pallas_src>
import functools

import jax
import jax.numpy as jnp
from jax.experimental import pallas as pl
from jax.experimental.pallas import tpu as pltpu

# Contract the last dim of both operands (A @ B^T), the standard q.k^T pattern.
_NT_DIMS = (((1,), (1,)), ((), ()))


# --------------------------------------------------------------------------- #
# Static, host-side device probing                                            #
# --------------------------------------------------------------------------- #
@functools.lru_cache(maxsize=None)
def _device_kind() -> str:
    try:
        return jax.devices()[0].device_kind.lower()
    except Exception:          # no accelerator visible; conservative defaults
        return ""


def _is_v7x() -> bool:
    k = _device_kind()
    return ("v7" in k) or ("7x" in k)


def _bf16_epilogue() -> bool:
    # v6e / v7x have bf16 VALU support; v5e (and older) do not.
    k = _device_kind()
    return ("v6" in k) or _is_v7x()


def _dimension_semantics():
    # Only core_parallel actually splits a grid axis across v7x's two
    # TensorCores; plain "parallel" is fine on 1-TC chips (v5e/v6e).
    if _is_v7x():
        try:
            return (pltpu.CORE_PARALLEL,)
        except AttributeError:  # pragma: no cover
            pass
    return ("parallel",)


def _vmem_limit_bytes() -> int:
    # v7x: 64 MiB physical per TC (32 MiB scoped default)  -> 40 MiB.
    # v5e/v6e: 128 MiB physical (16/32 MiB scoped default) -> 80 MiB.
    return (40 if _is_v7x() else 80) * 1024 * 1024


def _vmem_budget_bytes() -> int:
    # Tile-selection budget: stay well inside the limit above.
    return (24 if _is_v7x() else 48) * 1024 * 1024


# --------------------------------------------------------------------------- #
# Kernel                                                                      #
# --------------------------------------------------------------------------- #
def _mlp_kernel(x_ref,
                w1_ref, b1_ref,
                w2_ref, b2_ref,
                w3_ref, b3_ref,
                w4r_ref, b4_ref,
                o_ref,
                *, bf16_ep):
    bf16 = jnp.bfloat16
    f32 = jnp.float32

    def bias_relu(acc, b_ref):
        if bf16_ep:
            # bf16 VPU path (v6e / v7x): halves VALU element-ops and vreg
            # pressure on the (bb,256)/(bb,128) intermediates.
            return jnp.maximum(acc.astype(bf16) + b_ref[...].astype(bf16), 0.0)
        # f32 VPU path (v5e has no bf16 VALU); cast afterwards for the MXU.
        return jnp.maximum(acc + b_ref[...], 0.0).astype(bf16)

    # The wrapper feeds f32 x directly (no separate XLA convert/pad pass over
    # x); this cast is a cheap VPU op that hides under the MXU.
    x = x_ref[...].astype(bf16)                                    # (bb, H)

    h = bias_relu(jnp.dot(x, w1_ref[...], preferred_element_type=f32), b1_ref)
    h = bias_relu(jnp.dot(h, w2_ref[...], preferred_element_type=f32), b2_ref)
    h = bias_relu(jnp.dot(h, w3_ref[...], preferred_element_type=f32), b3_ref)

    # Final layer computed transposed so the written tile is the lane-dense
    # (1, block_b) row (unmasked vst).  w4r_ref holds the single output row
    # replicated to 8 sublanes (full-sublane LHS); row 0 is the real output.
    s = jax.lax.dot_general(w4r_ref[...], h, _NT_DIMS,
                            preferred_element_type=f32)            # (8, bb)
    o_ref[...] = (s[0:1, :] + b4_ref[...]).astype(o_ref.dtype)     # (1, bb)


# --------------------------------------------------------------------------- #
# Tile selection                                                              #
# --------------------------------------------------------------------------- #
def _round_up(x, m):
    return ((x + m - 1) // m) * m


def _choose_block_b(batch, hidden, max_block=2048):
    """Batch tile: as large as possible while everything live fits in the
    per-generation VMEM budget; multiple of 128 lanes; and biased toward an
    even number of grid steps whenever the batch spans more than one tile."""
    budget = _vmem_budget_bytes()
    # Fixed residents: single-buffered bf16 weights + f32 biases + slack.
    fixed = ((hidden * 256 + 256 * 128 + 128 * 64 + 8 * 64) * 2
             + (256 + 128 + 64 + 1) * 4 + (1 << 20))
    # Per-row cost: double-buffered f32 x tile, f32 accumulators + bf16
    # activations of the three hidden layers, double-buffered f32 out lane.
    per_row = hidden * 4 * 2 + (256 + 128 + 64) * (4 + 2) + 4 * 2
    cap = max(128, ((budget - fixed) // per_row) // 128 * 128)

    b_pad128 = _round_up(max(batch, 1), 128)
    bb = min(max_block, cap, b_pad128)

    if b_pad128 > 128:
        nb = -(-b_pad128 // bb)
        if nb % 2:   # odd step count -> shrink the tile toward an even split
            bb = max(128, _round_up(-(-b_pad128 // (nb + 1)), 128))
    return bb


# --------------------------------------------------------------------------- #
# pallas_call wrapper                                                         #
# --------------------------------------------------------------------------- #
@functools.partial(jax.jit, static_argnames=("block_b", "num_blocks", "bf16_ep"))
def _forward(x, params, *, block_b, num_blocks, bf16_ep):
    B, H = x.shape
    bf16 = jnp.bfloat16

    # bf16 matmul operands (f32 MXU accumulation in-kernel); biases stay f32
    # and are cast (or not) by the kernel's per-generation epilogue.
    w1 = params["w1"].astype(bf16)
    w2 = params["w2"].astype(bf16)
    w3 = params["w3"].astype(bf16)
    w4r = jnp.tile(params["w4"].reshape(1, -1), (8, 1)).astype(bf16)  # (8, 64)
    b1, b2, b3 = params["b1"], params["b2"], params["b3"]
    b4 = params["b4"].reshape(1, 1)

    b_pad = num_blocks * block_b
    if b_pad != B:
        x = jnp.pad(x, ((0, b_pad - B), (0, 0)))   # pad once, in f32

    def const_spec(shape):
        nd = len(shape)
        idx = lambda i, _nd=nd: (0,) * _nd
        try:
            # Constant index map -> nothing to double-buffer; Buffered(1)
            # frees the duplicate VMEM buffer (matters for w1 at large H,
            # especially under v7x's 64 MiB physical VMEM).
            return pl.BlockSpec(shape, idx, pipeline_mode=pl.Buffered(1))
        except Exception:   # older pallas without pipeline_mode support
            return pl.BlockSpec(shape, idx)

    flops = 2 * b_pad * (H * 256 + 256 * 128 + 128 * 64 + 64 * 1)
    bytes_accessed = (b_pad * H * 4                                # x (f32)
                      + (H * 256 + 256 * 128 + 128 * 64 + 8 * 64) * 2
                      + (256 + 128 + 64 + 1) * 4                   # biases
                      + b_pad * 4)                                 # out (f32)

    out = pl.pallas_call(
        functools.partial(_mlp_kernel, bf16_ep=bf16_ep),
        out_shape=jax.ShapeDtypeStruct((1, b_pad), jnp.float32),
        grid_spec=pltpu.PrefetchScalarGridSpec(
            num_scalar_prefetch=0,
            grid=(num_blocks,),
            in_specs=[
                pl.BlockSpec((block_b, H), lambda i: (i, 0)),      # f32 x tile
                const_spec(w1.shape), const_spec(b1.shape),
                const_spec(w2.shape), const_spec(b2.shape),
                const_spec(w3.shape), const_spec(b3.shape),
                const_spec(w4r.shape), const_spec(b4.shape),
            ],
            out_specs=pl.BlockSpec((1, block_b), lambda i: (0, i)),
        ),
        compiler_params=pltpu.CompilerParams(
            dimension_semantics=_dimension_semantics(),
            vmem_limit_bytes=_vmem_limit_bytes()),
        cost_estimate=pl.CostEstimate(flops=flops, transcendentals=0,
                                      bytes_accessed=bytes_accessed),
    )(x, w1, b1, w2, b2, w3, b3, w4r, b4)

    # (1, b_pad) batch-ordered row; drop padding and restore (B, 1).
    return out.reshape(-1)[:B].reshape(B, 1)


def hidden2confidence_forward(x, params, block_b=None):
    """x: (B, H) float32. params: dict of (in,out) weights / (1,out) biases.

    Returns (B, 1) float32, matching torch's Sequential MLP forward (computed
    with bf16 matmul operands + f32 accumulation on the MXU)."""
    B, H = x.shape
    if block_b is None:
        block_b = _choose_block_b(B, H)
    num_blocks = -(-B // block_b)
    # Keep the number of grid steps even when there is more than one, so a
    # CORE_PARALLEL split on v7x gives both TensorCores equal work.
    if num_blocks > 1 and num_blocks % 2:
        num_blocks += 1
    return _forward(x, params, block_b=block_b, num_blocks=num_blocks,
                    bf16_ep=_bf16_epilogue())


# --------------------------------------------------------------------------- #
# Parameter init & reference                                                  #
# --------------------------------------------------------------------------- #
def init_params(key, hidden_layer_size):
    """Deterministic init mimicking torch.nn.Linear default U[-1/sqrt(fan_in), +]."""
    dims = [hidden_layer_size, 256, 128, 64, 1]
    params = {}
    keys = jax.random.split(key, 2 * (len(dims) - 1))
    for li in range(len(dims) - 1):
        fan_in, fan_out = dims[li], dims[li + 1]
        bound = 1.0 / (fan_in ** 0.5)
        w = jax.random.uniform(keys[2 * li], (fan_in, fan_out),
                               minval=-bound, maxval=bound, dtype=jnp.float32)
        b = jax.random.uniform(keys[2 * li + 1], (1, fan_out),
                               minval=-bound, maxval=bound, dtype=jnp.float32)
        params[f"w{li + 1}"] = w
        params[f"b{li + 1}"] = b
    return params


def _reference_forward(x, params, bf16_epilogue=False):
    """Pure-JAX reference mirroring the kernel numerics (bf16 operands,
    f32 MXU accumulation, per-generation epilogue precision)."""
    bf16 = jnp.bfloat16

    def lin(h, w):
        return jnp.dot(h.astype(bf16), w.astype(bf16),
                       preferred_element_type=jnp.float32)

    def act(acc, b):
        if bf16_epilogue:
            return jnp.maximum(acc.astype(bf16) + b.astype(bf16), 0.0)
        return jnp.maximum(acc + b, 0.0)

    h = act(lin(x, params["w1"]), params["b1"])
    h = act(lin(h, params["w2"]), params["b2"])
    h = act(lin(h, params["w3"]), params["b3"])
    return lin(h, params["w4"]) + params["b4"]


if __name__ == "__main__":
    hidden_layer_size = 32   # e.g. scorer on a small hidden layer
    batch = 8

    key = jax.random.PRNGKey(0)
    k_param, k_x = jax.random.split(key)
    params = init_params(k_param, hidden_layer_size)
    x = jax.random.normal(k_x, (batch, hidden_layer_size), dtype=jnp.float32)

    out = hidden2confidence_forward(x, params)
    out = jax.block_until_ready(out)

    ref = _reference_forward(x, params, bf16_epilogue=_bf16_epilogue())
    assert out.shape == (batch, 1)
    assert bool(jnp.allclose(out, ref, atol=2e-3, rtol=2e-3)), "mismatch vs reference"

    print("KERNEL_OK")
</pallas_src>

<mosaic_0001>
module attributes {stable_mosaic.version = 11 : i64} {
  func.func @_mlp_kernel(%arg0: i32, %arg1: memref<128x32xf32, #tpu.memory_space<vmem>>, %arg2: memref<32x256xbf16, #tpu.memory_space<vmem>>, %arg3: memref<1x256xf32, #tpu.memory_space<vmem>>, %arg4: memref<256x128xbf16, #tpu.memory_space<vmem>>, %arg5: memref<1x128xf32, #tpu.memory_space<vmem>>, %arg6: memref<128x64xbf16, #tpu.memory_space<vmem>>, %arg7: memref<1x64xf32, #tpu.memory_space<vmem>>, %arg8: memref<8x64xbf16, #tpu.memory_space<vmem>>, %arg9: memref<1x1xf32, #tpu.memory_space<vmem>>, %arg10: memref<1x128xf32, #tpu.memory_space<vmem>>) attributes {dimension_semantics = [#tpu.dimension_semantics<parallel>], iteration_bounds = array<i64: 1>, scalar_prefetch = 0 : i64, scratch_operands = 0 : i64, tpu.core_type = #tpu.core_type<tc>, window_params = [{transform_indices = @transform_0, window_bounds = array<i64: 128, 32>}, {pipeline_mode = #tpu.pipeline_mode<synchronous>, transform_indices = @transform_1, window_bounds = array<i64: 32, 256>}, {pipeline_mode = #tpu.pipeline_mode<synchronous>, transform_indices = @transform_2, window_bounds = array<i64: 1, 256>}, {pipeline_mode = #tpu.pipeline_mode<synchronous>, transform_indices = @transform_3, window_bounds = array<i64: 256, 128>}, {pipeline_mode = #tpu.pipeline_mode<synchronous>, transform_indices = @transform_4, window_bounds = array<i64: 1, 128>}, {pipeline_mode = #tpu.pipeline_mode<synchronous>, transform_indices = @transform_5, window_bounds = array<i64: 128, 64>}, {pipeline_mode = #tpu.pipeline_mode<synchronous>, transform_indices = @transform_6, window_bounds = array<i64: 1, 64>}, {pipeline_mode = #tpu.pipeline_mode<synchronous>, transform_indices = @transform_7, window_bounds = array<i64: 8, 64>}, {pipeline_mode = #tpu.pipeline_mode<synchronous>, transform_indices = @transform_8, window_bounds = array<i64: 1, 1>}, {transform_indices = @transform_9, window_bounds = array<i64: 1, 128>}]} {
    %c0 = arith.constant 0 : index
    %c0_0 = arith.constant 0 : index
    %0 = vector.load %arg1[%c0, %c0_0] : memref<128x32xf32, #tpu.memory_space<vmem>>, vector<128x32xf32>
    %1 = arith.truncf %0 : vector<128x32xf32> to vector<128x32xbf16>
    %c0_1 = arith.constant 0 : index
    %c0_2 = arith.constant 0 : index
    %2 = vector.load %arg2[%c0_1, %c0_2] : memref<32x256xbf16, #tpu.memory_space<vmem>>, vector<32x256xbf16>
    %cst = arith.constant dense<0.000000e+00> : vector<128x256xf32>
    %3 = tpu.matmul %1, %2, %cst {dimension_numbers = #tpu.dot_dimension_numbers<[1], [0], [0], [1], [0, 0, 1, 1], [], []>} : vector<128x32xbf16>, vector<32x256xbf16>, vector<128x256xf32> -> vector<128x256xf32>
    %c0_3 = arith.constant 0 : index
    %c0_4 = arith.constant 0 : index
    %4 = vector.load %arg3[%c0_3, %c0_4] : memref<1x256xf32, #tpu.memory_space<vmem>>, vector<1x256xf32>
    %5 = vector.broadcast %4 : vector<1x256xf32> to vector<128x256xf32>
    %6 = arith.addf %3, %5 : vector<128x256xf32>
    %cst_5 = arith.constant 0.000000e+00 : f32
    %7 = vector.broadcast %cst_5 : f32 to vector<128x256xf32>
    %8 = arith.maximumf %6, %7 : vector<128x256xf32>
    %9 = arith.truncf %8 : vector<128x256xf32> to vector<128x256xbf16>
    %c0_6 = arith.constant 0 : index
    %c0_7 = arith.constant 0 : index
    %10 = vector.load %arg4[%c0_6, %c0_7] : memref<256x128xbf16, #tpu.memory_space<vmem>>, vector<256x128xbf16>
    %cst_8 = arith.constant dense<0.000000e+00> : vector<128x128xf32>
    %11 = tpu.matmul %9, %10, %cst_8 {dimension_numbers = #tpu.dot_dimension_numbers<[1], [0], [0], [1], [0, 0, 1, 1], [], []>} : vector<128x256xbf16>, vector<256x128xbf16>, vector<128x128xf32> -> vector<128x128xf32>
    %c0_9 = arith.constant 0 : index
    %c0_10 = arith.constant 0 : index
    %12 = vector.load %arg5[%c0_9, %c0_10] : memref<1x128xf32, #tpu.memory_space<vmem>>, vector<1x128xf32>
    %13 = vector.broadcast %12 : vector<1x128xf32> to vector<128x128xf32>
    %14 = arith.addf %11, %13 : vector<128x128xf32>
    %cst_11 = arith.constant 0.000000e+00 : f32
    %15 = vector.broadcast %cst_11 : f32 to vector<128x128xf32>
    %16 = arith.maximumf %14, %15 : vector<128x128xf32>
    %17 = arith.truncf %16 : vector<128x128xf32> to vector<128x128xbf16>
    %c0_12 = arith.constant 0 : index
    %c0_13 = arith.constant 0 : index
    %18 = vector.load %arg6[%c0_12, %c0_13] : memref<128x64xbf16, #tpu.memory_space<vmem>>, vector<128x64xbf16>
    %cst_14 = arith.constant dense<0.000000e+00> : vector<128x64xf32>
    %19 = tpu.matmul %17, %18, %cst_14 {dimension_numbers = #tpu.dot_dimension_numbers<[1], [0], [0], [1], [0, 0, 1, 1], [], []>} : vector<128x128xbf16>, vector<128x64xbf16>, vector<128x64xf32> -> vector<128x64xf32>
    %c0_15 = arith.constant 0 : index
    %c0_16 = arith.constant 0 : index
    %20 = vector.load %arg7[%c0_15, %c0_16] : memref<1x64xf32, #tpu.memory_space<vmem>>, vector<1x64xf32>
    %21 = vector.broadcast %20 : vector<1x64xf32> to vector<128x64xf32>
    %22 = arith.addf %19, %21 : vector<128x64xf32>
    %cst_17 = arith.constant 0.000000e+00 : f32
    %23 = vector.broadcast %cst_17 : f32 to vector<128x64xf32>
    %24 = arith.maximumf %22, %23 : vector<128x64xf32>
    %25 = arith.truncf %24 : vector<128x64xf32> to vector<128x64xbf16>
    %c0_18 = arith.constant 0 : index
    %c0_19 = arith.constant 0 : index
    %26 = vector.load %arg8[%c0_18, %c0_19] : memref<8x64xbf16, #tpu.memory_space<vmem>>, vector<8x64xbf16>
    %cst_20 = arith.constant dense<0.000000e+00> : vector<8x128xf32>
    %27 = tpu.matmul %26, %25, %cst_20 {dimension_numbers = #tpu.dot_dimension_numbers<[1], [1], [0], [0], [0, 0, 1, 0], [], []>} : vector<8x64xbf16>, vector<128x64xbf16>, vector<8x128xf32> -> vector<8x128xf32>
    %28 = vector.extract_strided_slice %27 {offsets = [0, 0], sizes = [1, 128], strides = [1, 1]} : vector<8x128xf32> to vector<1x128xf32>
    %c0_21 = arith.constant 0 : index
    %c0_22 = arith.constant 0 : index
    %29 = vector.load %arg9[%c0_21, %c0_22] : memref<1x1xf32, #tpu.memory_space<vmem>>, vector<1x1xf32>
    %30 = vector.broadcast %29 : vector<1x1xf32> to vector<1x128xf32>
    %31 = arith.addf %28, %30 : vector<1x128xf32>
    %c0_23 = arith.constant 0 : index
    %c0_24 = arith.constant 0 : index
    %32 = vector.load %arg10[%c0_23, %c0_24] : memref<1x128xf32, #tpu.memory_space<vmem>>, vector<1x128xf32>
    tpu.vector_store %arg10[%c0_23, %c0_24], %31 {strides = array<i32>} : memref<1x128xf32, #tpu.memory_space<vmem>>, vector<1x128xf32>,
    return
  }
  func.func @transform_0(%arg0: i32) -> (i32, i32) {
    %c0_i32 = arith.constant 0 : i32
    %c0_i32_0 = arith.constant 0 : i32
    return %arg0, %c0_i32 : i32, i32
  }
  func.func @transform_1(%arg0: i32) -> (i32, i32) {
    %c0_i32 = arith.constant 0 : i32
    %c0_i32_0 = arith.constant 0 : i32
    %c0_i32_1 = arith.constant 0 : i32
    return %c0_i32, %c0_i32_0 : i32, i32
  }
  func.func @transform_2(%arg0: i32) -> (i32, i32) {
    %c0_i32 = arith.constant 0 : i32
    %c0_i32_0 = arith.constant 0 : i32
    %c0_i32_1 = arith.constant 0 : i32
    return %c0_i32, %c0_i32_0 : i32, i32
  }
  func.func @transform_3(%arg0: i32) -> (i32, i32) {
    %c0_i32 = arith.constant 0 : i32
    %c0_i32_0 = arith.constant 0 : i32
    %c0_i32_1 = arith.constant 0 : i32
    return %c0_i32, %c0_i32_0 : i32, i32
  }
  func.func @transform_4(%arg0: i32) -> (i32, i32) {
    %c0_i32 = arith.constant 0 : i32
    %c0_i32_0 = arith.constant 0 : i32
    %c0_i32_1 = arith.constant 0 : i32
    return %c0_i32, %c0_i32_0 : i32, i32
  }
  func.func @transform_5(%arg0: i32) -> (i32, i32) {
    %c0_i32 = arith.constant 0 : i32
    %c0_i32_0 = arith.constant 0 : i32
    %c0_i32_1 = arith.constant 0 : i32
    return %c0_i32, %c0_i32_0 : i32, i32
  }
  func.func @transform_6(%arg0: i32) -> (i32, i32) {
    %c0_i32 = arith.constant 0 : i32
    %c0_i32_0 = arith.constant 0 : i32
    %c0_i32_1 = arith.constant 0 : i32
    return %c0_i32, %c0_i32_0 : i32, i32
  }
  func.func @transform_7(%arg0: i32) -> (i32, i32) {
    %c0_i32 = arith.constant 0 : i32
    %c0_i32_0 = arith.constant 0 : i32
    %c0_i32_1 = arith.constant 0 : i32
    return %c0_i32, %c0_i32_0 : i32, i32
  }
  func.func @transform_8(%arg0: i32) -> (i32, i32) {
    %c0_i32 = arith.constant 0 : i32
    %c0_i32_0 = arith.constant 0 : i32
    %c0_i32_1 = arith.constant 0 : i32
    return %c0_i32, %c0_i32_0 : i32, i32
  }
  func.func @transform_9(%arg0: i32) -> (i32, i32) {
    %c0_i32 = arith.constant 0 : i32
    %c0_i32_0 = arith.constant 0 : i32
    return %c0_i32, %arg0 : i32, i32
  }
}

</mosaic_0001>

<llo_original>
// kernel: _forward.1
$region0: #{_forward.1}
  #allocation0 [shape = 'u32[]', space=smem, size = 0x4, offset = 0x4, fixed_abs, tag = 'smem constant byte address 0x4 - core index']
  #allocation1 [shape = 'u32[72,128]{1,0:T(1,128)}', space=vmem, size = 0x9000, scoped, tag = 'internal scratch']
  #allocation2 [shape = 'f32[1,1]{1,0:T(1,128)S(1)}', space=vmem, size = 0x200, scoped, tag = 'scoped memory for _forward.1']
  %s0 = inlined_call_operand.vmem [shape: f32[128,32], index: 0, kind: input, shape index: {}]
  %s1 = inlined_call_operand.vmem [shape: bf16[32,256], index: 1, kind: input, shape index: {}]
  %s2 = inlined_call_operand.vmem [shape: f32[1,256], index: 2, kind: input, shape index: {}]
  %s3 = inlined_call_operand.vmem [shape: bf16[256,128], index: 3, kind: input, shape index: {}]
  %s4 = inlined_call_operand.vmem [shape: f32[1,128], index: 4, kind: input, shape index: {}]
  %s5 = inlined_call_operand.vmem [shape: bf16[128,64], index: 5, kind: input, shape index: {}]
  %s6 = inlined_call_operand.vmem [shape: f32[1,64], index: 6, kind: input, shape index: {}]
  %s7 = inlined_call_operand.vmem [shape: bf16[8,64], index: 7, kind: input, shape index: {}]
  %s8 = inlined_call_operand.<no memory space> [shape: f32[1,1], index: 8, kind: input, shape index: {}]
  %s9 = inlined_call_operand.vmem [shape: f32[1,128], index: 9, kind: output, shape index: {}]
  %s10 = sld [smem:[#allocation0]]
  $region46: #{_forward.1} parent=0
    _
  %s12 = ssub.s32 1, %s10
  %s13 = scalar_select 0, %s12, %s10
  %v14 = vstv %s8
  %15 = vst [vmem:[#allocation2] sm:$0x1] %v14
  // Predicated region
  $region2: #{_forward.1} parent=0 // pred_check
    _
  $region3: #{_forward.1} parent=0 // pred_check_branch
    %17 = sbr.rel (0) target = $region5
  $region4: #{_forward.1} parent=0 // pred_region
    _
  $region5: #{_forward.1} parent=0 // pred_fallthru
    _
  // Predicated region
  $region6: #{_forward.1} parent=0 // pred_check
    _
  $region7: #{_forward.1} parent=0 // pred_check_branch
    %19 = sbr.rel (0) target = $region9
  $region8: #{_forward.1} parent=0 // pred_region
    _
  $region9: #{_forward.1} parent=0 // pred_fallthru
    _
  // Predicated region
  $region10: #{_forward.1} parent=0 // pred_check
    _
  $region11: #{_forward.1} parent=0 // pred_check_branch
    %21 = sbr.rel (0) target = $region13
  $region12: #{_forward.1} parent=0 // pred_region
    _
  $region13: #{_forward.1} parent=0 // pred_fallthru
    _
  // Predicated region
  $region14: #{_forward.1} parent=0 // pred_check
    _
  $region15: #{_forward.1} parent=0 // pred_check_branch
    %23 = sbr.rel (0) target = $region17
  $region16: #{_forward.1} parent=0 // pred_region
    _
  $region17: #{_forward.1} parent=0 // pred_fallthru
    _
  // Predicated region
  $region18: #{_forward.1} parent=0 // pred_check
    _
  $region19: #{_forward.1} parent=0 // pred_check_branch
    %25 = sbr.rel (0) target = $region21
  $region20: #{_forward.1} parent=0 // pred_region
    _
  $region21: #{_forward.1} parent=0 // pred_fallthru
    _
  // Predicated region
  $region22: #{_forward.1} parent=0 // pred_check
    _
  $region23: #{_forward.1} parent=0 // pred_check_branch
    %27 = sbr.rel (0) target = $region25
  $region24: #{_forward.1} parent=0 // pred_region
    _
  $region25: #{_forward.1} parent=0 // pred_fallthru
    _
  // Predicated region
  $region26: #{_forward.1} parent=0 // pred_check
    _
  $region27: #{_forward.1} parent=0 // pred_check_branch
    %29 = sbr.rel (0) target = $region29
  $region28: #{_forward.1} parent=0 // pred_region
    _
  $region29: #{_forward.1} parent=0 // pred_fallthru
    _
  // Predicated region
  $region30: #{_forward.1} parent=0 // pred_check
    _
  $region31: #{_forward.1} parent=0 // pred_check_branch
    %31 = sbr.rel (0) target = $region33
  $region32: #{_forward.1} parent=0 // pred_region
    _
  $region33: #{_forward.1} parent=0 // pred_fallthru
    _
  // Predicated region
  $region34: #{_forward.1} parent=0 // pred_check
    _
  $region35: #{_forward.1} parent=0 // pred_check_branch
    %33 = sbr.rel (0) target = $region37
  $region36: #{_forward.1} parent=0 // pred_region
    _
  $region37: #{_forward.1} parent=0 // pred_fallthru
    _
  %v35 = vld [vmem:[%s0] sm:$0xff]
  %v36 = vld [vmem:[%s0 + $0x8] sm:$0xff]
  %v37 = vld [vmem:[%s0 + $0x10] sm:$0xff]
  %v38 = vld [vmem:[%s0 + $0x18] sm:$0xff]
  %v39 = vld [vmem:[%s0 + $0x20] sm:$0xff]
  %v40 = vld [vmem:[%s0 + $0x28] sm:$0xff]
  %v41 = vld [vmem:[%s0 + $0x30] sm:$0xff]
  %v42 = vld [vmem:[%s0 + $0x38] sm:$0xff]
  %v43 = vld [vmem:[%s0 + $0x40] sm:$0xff]
  %v44 = vld [vmem:[%s0 + $0x48] sm:$0xff]
  %v45 = vld [vmem:[%s0 + $0x50] sm:$0xff]
  %v46 = vld [vmem:[%s0 + $0x58] sm:$0xff]
  %v47 = vld [vmem:[%s0 + $0x60] sm:$0xff]
  %v48 = vld [vmem:[%s0 + $0x68] sm:$0xff]
  %v49 = vld [vmem:[%s0 + $0x70] sm:$0xff]
  %v50 = vld [vmem:[%s0 + $0x78] sm:$0xff]
  %v51 = vpack.c.bf16 %v36, %v35
  %v52 = vpack.c.bf16 %v38, %v37
  %v53 = vpack.c.bf16 %v40, %v39
  %v54 = vpack.c.bf16 %v42, %v41
  %v55 = vpack.c.bf16 %v44, %v43
  %v56 = vpack.c.bf16 %v46, %v45
  %v57 = vpack.c.bf16 %v48, %v47
  %v58 = vpack.c.bf16 %v50, %v49
  %v59 = vld [vmem:[%s1] sm:$0xff]
  %v60 = vld [vmem:[%s1 + $0x8] sm:$0xff]
  %v61 = vld [vmem:[%s1 + $0x10] sm:$0xff]
  %v62 = vld [vmem:[%s1 + $0x18] sm:$0xff]
  %v63 = vld [vmem:[%s2] sm:$0x3]
  %v65 = vperm.slane %v63, 0
  %v66 = vperm.slane %v63, 1
  %v73 = vunpack.c.l.b16 %v59
  %v74 = vunpack.c.h.b16 %v59
  %v75 = vunpack.c.l.b16 %v60
  %v76 = vunpack.c.h.b16 %v60
  %v77 = vunpack.c.l.b16 %v61
  %v78 = vunpack.c.h.b16 %v61
  %v79 = vunpack.c.l.b16 %v62
  %v80 = vunpack.c.h.b16 %v62
  %v81 = vpack.c.b16 %v75, %v73
  %v82 = vpack.c.b16 %v76, %v74
  %v83 = vpack.c.b16 %v79, %v77
  %v84 = vpack.c.b16 %v80, %v78
  %vm89 = vcmask 261120
  %v91 = vsel %vm89, %v51, 0
  %v94 = vsel %vm89, %v52, 0
  %v97 = vsel %vm89, %v53, 0
  %v100 = vsel %vm89, %v54, 0
  %v103 = vsel %vm89, %v55, 0
  %v106 = vsel %vm89, %v56, 0
  %v109 = vsel %vm89, %v57, 0
  %v112 = vsel %vm89, %v58, 0
  %114 = vmatpush.bf16.msra.mxu0 0
  %115 = vmatpush.bf16.msra.mxu0 0
  %116 = vmatpush.bf16.msra.mxu0 0
  %117 = vmatpush.bf16.msra.mxu0 0
  %118 = vmatpush.bf16.msra.mxu0 0
  %119 = vmatpush.bf16.msra.mxu0 0
  %120 = vmatpush.bf16.msra.mxu0 %v83
  %121 = vmatpush.bf16.msra.mxu0 %v81
  %122 = vmatmul.bf16.gmra.mxu0 %v91
  %v123 = vpop.f32.mrf.mxu0
  %v124 = vadd.f32 %v65, %v123
  %v125 = vpop.f32.mrf.mxu0
  %v126 = vadd.f32 %v65, %v125
  %127 = vmatmul.bf16.gmra.mxu0 %v94
  %v128 = vpop.f32.mrf.mxu0
  %v129 = vadd.f32 %v65, %v128
  %v130 = vpop.f32.mrf.mxu0
  %v131 = vadd.f32 %v65, %v130
  %132 = vmatmul.bf16.gmra.mxu0 %v97
  %v133 = vpop.f32.mrf.mxu0
  %v134 = vadd.f32 %v65, %v133
  %v135 = vpop.f32.mrf.mxu0
  %v136 = vadd.f32 %v65, %v135
  %137 = vmatmul.bf16.gmra.mxu0 %v100
  %v138 = vpop.f32.mrf.mxu0
  %v139 = vadd.f32 %v65, %v138
  %v140 = vpop.f32.mrf.mxu0
  %v141 = vadd.f32 %v65, %v140
  %142 = vmatmul.bf16.gmra.mxu0 %v103
  %v143 = vpop.f32.mrf.mxu0
  %v144 = vadd.f32 %v65, %v143
  %v145 = vpop.f32.mrf.mxu0
  %v146 = vadd.f32 %v65, %v145
  %147 = vmatmul.bf16.gmra.mxu0 %v106
  %v148 = vpop.f32.mrf.mxu0
  %v149 = vadd.f32 %v65, %v148
  %v150 = vpop.f32.mrf.mxu0
  %v151 = vadd.f32 %v65, %v150
  %152 = vmatmul.bf16.gmra.mxu0 %v109
  %v153 = vpop.f32.mrf.mxu0
  %v154 = vadd.f32 %v65, %v153
  %v155 = vpop.f32.mrf.mxu0
  %v156 = vadd.f32 %v65, %v155
  %157 = vmatmul.bf16.gmra.mxu0 %v112
  %v158 = vpop.f32.mrf.mxu0
  %v159 = vadd.f32 %v65, %v158
  %v160 = vpop.f32.mrf.mxu0
  %v161 = vadd.f32 %v65, %v160
  %162 = vdwg.mxu0
  %163 = vmatpush.bf16.msra.mxu0 0
  %164 = vmatpush.bf16.msra.mxu0 0
  %165 = vmatpush.bf16.msra.mxu0 0
  %166 = vmatpush.bf16.msra.mxu0 0
  %167 = vmatpush.bf16.msra.mxu0 0
  %168 = vmatpush.bf16.msra.mxu0 0
  %169 = vmatpush.bf16.msra.mxu0 %v84
  %170 = vmatpush.bf16.msra.mxu0 %v82
  %171 = vmatmul.bf16.gmra.mxu0 %v91
  %v172 = vpop.f32.mrf.mxu0
  %v173 = vadd.f32 %v66, %v172
  %v174 = vpop.f32.mrf.mxu0
  %v175 = vadd.f32 %v66, %v174
  %176 = vmatmul.bf16.gmra.mxu0 %v94
  %v177 = vpop.f32.mrf.mxu0
  %v178 = vadd.f32 %v66, %v177
  %v179 = vpop.f32.mrf.mxu0
  %v180 = vadd.f32 %v66, %v179
  %181 = vmatmul.bf16.gmra.mxu0 %v97
  %v182 = vpop.f32.mrf.mxu0
  %v183 = vadd.f32 %v66, %v182
  %v184 = vpop.f32.mrf.mxu0
  %v185 = vadd.f32 %v66, %v184
  %186 = vmatmul.bf16.gmra.mxu0 %v100
  %v187 = vpop.f32.mrf.mxu0
  %v188 = vadd.f32 %v66, %v187
  %v189 = vpop.f32.mrf.mxu0
  %v190 = vadd.f32 %v66, %v189
  %191 = vmatmul.bf16.gmra.mxu0 %v103
  %v192 = vpop.f32.mrf.mxu0
  %v193 = vadd.f32 %v66, %v192
  %v194 = vpop.f32.mrf.mxu0
  %v195 = vadd.f32 %v66, %v194
  %196 = vmatmul.bf16.gmra.mxu0 %v106
  %v197 = vpop.f32.mrf.mxu0
  %v198 = vadd.f32 %v66, %v197
  %v199 = vpop.f32.mrf.mxu0
  %v200 = vadd.f32 %v66, %v199
  %201 = vmatmul.bf16.gmra.mxu0 %v109
  %v202 = vpop.f32.mrf.mxu0
  %v203 = vadd.f32 %v66, %v202
  %v204 = vpop.f32.mrf.mxu0
  %v205 = vadd.f32 %v66, %v204
  %206 = vmatmul.bf16.gmra.mxu0 %v112
  %v207 = vpop.f32.mrf.mxu0
  %v208 = vadd.f32 %v66, %v207
  %v209 = vpop.f32.mrf.mxu0
  %v210 = vadd.f32 %v66, %v209
  %211 = vdwg.mxu0
  %v212 = vmax.f32 %v124, 0.0
  %v213 = vmax.f32 %v173, 0.0
  %v214 = vmax.f32 %v126, 0.0
  %v215 = vmax.f32 %v175, 0.0
  %v216 = vmax.f32 %v129, 0.0
  %v217 = vmax.f32 %v178, 0.0
  %v218 = vmax.f32 %v131, 0.0
  %v219 = vmax.f32 %v180, 0.0
  %v220 = vmax.f32 %v134, 0.0
  %v221 = vmax.f32 %v183, 0.0
  %v222 = vmax.f32 %v136, 0.0
  %v223 = vmax.f32 %v185, 0.0
  %v224 = vmax.f32 %v139, 0.0
  %v225 = vmax.f32 %v188, 0.0
  %v226 = vmax.f32 %v141, 0.0
  %v227 = vmax.f32 %v190, 0.0
  %v228 = vmax.f32 %v144, 0.0
  %v229 = vmax.f32 %v193, 0.0
  %v230 = vmax.f32 %v146, 0.0
  %v231 = vmax.f32 %v195, 0.0
  %v232 = vmax.f32 %v149, 0.0
  %v233 = vmax.f32 %v198, 0.0
  %v234 = vmax.f32 %v151, 0.0
  %v235 = vmax.f32 %v200, 0.0
  %v236 = vmax.f32 %v154, 0.0
  %v237 = vmax.f32 %v203, 0.0
  %v238 = vmax.f32 %v156, 0.0
  %v239 = vmax.f32 %v205, 0.0
  %v240 = vmax.f32 %v159, 0.0
  %v241 = vmax.f32 %v208, 0.0
  %v242 = vmax.f32 %v161, 0.0
  %v243 = vmax.f32 %v210, 0.0
  %v244 = vpack.c.bf16 %v214, %v212
  %v245 = vpack.c.bf16 %v215, %v213
  %v246 = vpack.c.bf16 %v218, %v216
  %v247 = vpack.c.bf16 %v219, %v217
  %v248 = vpack.c.bf16 %v222, %v220
  %v249 = vpack.c.bf16 %v223, %v221
  %v250 = vpack.c.bf16 %v226, %v224
  %v251 = vpack.c.bf16 %v227, %v225
  %v252 = vpack.c.bf16 %v230, %v228
  %v253 = vpack.c.bf16 %v231, %v229
  %v254 = vpack.c.bf16 %v234, %v232
  %v255 = vpack.c.bf16 %v235, %v233
  %v256 = vpack.c.bf16 %v238, %v236
  %v257 = vpack.c.bf16 %v239, %v237
  %v258 = vpack.c.bf16 %v242, %v240
  %v259 = vpack.c.bf16 %v243, %v241
  %v260 = vld [vmem:[%s3] sm:$0xf]
  %v261 = vld [vmem:[%s3 + $0x4] sm:$0xf]
  %v262 = vld [vmem:[%s3 + $0x8] sm:$0xf]
  %v263 = vld [vmem:[%s3 + $0xc] sm:$0xf]
  %v264 = vld [vmem:[%s3 + $0x10] sm:$0xf]
  %v265 = vld [vmem:[%s3 + $0x14] sm:$0xf]
  %v266 = vld [vmem:[%s3 + $0x18] sm:$0xf]
  %v267 = vld [vmem:[%s3 + $0x1c] sm:$0xf]
  %v268 = vld [vmem:[%s3 + $0x20] sm:$0xf]
  %v269 = vld [vmem:[%s3 + $0x24] sm:$0xf]
  %v270 = vld [vmem:[%s3 + $0x28] sm:$0xf]
  %v271 = vld [vmem:[%s3 + $0x2c] sm:$0xf]
  %v272 = vld [vmem:[%s3 + $0x30] sm:$0xf]
  %v273 = vld [vmem:[%s3 + $0x34] sm:$0xf]
  %v274 = vld [vmem:[%s3 + $0x38] sm:$0xf]
  %v275 = vld [vmem:[%s3 + $0x3c] sm:$0xf]
  %v276 = vld [vmem:[%s3 + $0x40] sm:$0xf]
  %v277 = vld [vmem:[%s3 + $0x44] sm:$0xf]
  %v278 = vld [vmem:[%s3 + $0x48] sm:$0xf]
  %v279 = vld [vmem:[%s3 + $0x4c] sm:$0xf]
  %v280 = vld [vmem:[%s3 + $0x50] sm:$0xf]
  %v281 = vld [vmem:[%s3 + $0x54] sm:$0xf]
  %v282 = vld [vmem:[%s3 + $0x58] sm:$0xf]
  %v283 = vld [vmem:[%s3 + $0x5c] sm:$0xf]
  %v284 = vld [vmem:[%s3 + $0x60] sm:$0xf]
  %v285 = vld [vmem:[%s3 + $0x64] sm:$0xf]
  %v286 = vld [vmem:[%s3 + $0x68] sm:$0xf]
  %v287 = vld [vmem:[%s3 + $0x6c] sm:$0xf]
  %v288 = vld [vmem:[%s3 + $0x70] sm:$0xf]
  %v289 = vld [vmem:[%s3 + $0x74] sm:$0xf]
  %v290 = vld [vmem:[%s3 + $0x78] sm:$0xf]
  %v291 = vld [vmem:[%s3 + $0x7c] sm:$0xf]
  %v292 = vld [vmem:[%s4] sm:$0x1]
  %v294 = vperm.slane %v292, 0
  %v328 = vunpack.c.l.b16 %v260
  %v329 = vunpack.c.l.b16 %v261
  %v330 = vunpack.c.l.b16 %v262
  %v331 = vunpack.c.l.b16 %v263
  %v332 = vunpack.c.l.b16 %v264
  %v333 = vunpack.c.l.b16 %v265
  %v334 = vunpack.c.l.b16 %v266
  %v335 = vunpack.c.l.b16 %v267
  %v336 = vunpack.c.l.b16 %v268
  %v337 = vunpack.c.l.b16 %v269
  %v338 = vunpack.c.l.b16 %v270
  %v339 = vunpack.c.l.b16 %v271
  %v340 = vunpack.c.l.b16 %v272
  %v341 = vunpack.c.l.b16 %v273
  %v342 = vunpack.c.l.b16 %v274
  %v343 = vunpack.c.l.b16 %v275
  %v344 = vunpack.c.l.b16 %v276
  %v345 = vunpack.c.l.b16 %v277
  %v346 = vunpack.c.l.b16 %v278
  %v347 = vunpack.c.l.b16 %v279
  %v348 = vunpack.c.l.b16 %v280
  %v349 = vunpack.c.l.b16 %v281
  %v350 = vunpack.c.l.b16 %v282
  %v351 = vunpack.c.l.b16 %v283
  %v352 = vunpack.c.l.b16 %v284
  %v353 = vunpack.c.l.b16 %v285
  %v354 = vunpack.c.l.b16 %v286
  %v355 = vunpack.c.l.b16 %v287
  %v356 = vunpack.c.l.b16 %v288
  %v357 = vunpack.c.l.b16 %v289
  %v358 = vunpack.c.l.b16 %v290
  %v359 = vunpack.c.l.b16 %v291
  %v360 = vpack.c.b16 %v329, %v328
  %v361 = vpack.c.b16 %v331, %v330
  %v362 = vpack.c.b16 %v333, %v332
  %v363 = vpack.c.b16 %v335, %v334
  %v364 = vpack.c.b16 %v337, %v336
  %v365 = vpack.c.b16 %v339, %v338
  %v366 = vpack.c.b16 %v341, %v340
  %v367 = vpack.c.b16 %v343, %v342
  %v368 = vpack.c.b16 %v345, %v344
  %v369 = vpack.c.b16 %v347, %v346
  %v370 = vpack.c.b16 %v349, %v348
  %v371 = vpack.c.b16 %v351, %v350
  %v372 = vpack.c.b16 %v353, %v352
  %v373 = vpack.c.b16 %v355, %v354
  %v374 = vpack.c.b16 %v357, %v356
  %v375 = vpack.c.b16 %v359, %v358
  %392 = vmatpush.bf16.msra.mxu0 %v367
  %393 = vmatpush.bf16.msra.mxu0 %v366
  %394 = vmatpush.bf16.msra.mxu0 %v365
  %395 = vmatpush.bf16.msra.mxu0 %v364
  %396 = vmatpush.bf16.msra.mxu0 %v363
  %397 = vmatpush.bf16.msra.mxu0 %v362
  %398 = vmatpush.bf16.msra.mxu0 %v361
  %399 = vmatpush.bf16.msra.mxu0 %v360
  %400 = vmatmul.bf16.gmra.mxu0 %v244
  %v401 = vpop.f32.mrf.mxu0
  %v402 = vadd.f32 %v294, %v401
  %v403 = vpop.f32.mrf.mxu0
  %v404 = vadd.f32 %v294, %v403
  %405 = vmatmul.bf16.gmra.mxu0 %v246
  %v406 = vpop.f32.mrf.mxu0
  %v407 = vadd.f32 %v294, %v406
  %v408 = vpop.f32.mrf.mxu0
  %v409 = vadd.f32 %v294, %v408
  %410 = vmatmul.bf16.gmra.mxu0 %v248
  %v411 = vpop.f32.mrf.mxu0
  %v412 = vadd.f32 %v294, %v411
  %v413 = vpop.f32.mrf.mxu0
  %v414 = vadd.f32 %v294, %v413
  %415 = vmatmul.bf16.gmra.mxu0 %v250
  %v416 = vpop.f32.mrf.mxu0
  %v417 = vadd.f32 %v294, %v416
  %v418 = vpop.f32.mrf.mxu0
  %v419 = vadd.f32 %v294, %v418
  %420 = vmatmul.bf16.gmra.mxu0 %v252
  %v421 = vpop.f32.mrf.mxu0
  %v422 = vadd.f32 %v294, %v421
  %v423 = vpop.f32.mrf.mxu0
  %v424 = vadd.f32 %v294, %v423
  %425 = vmatmul.bf16.gmra.mxu0 %v254
  %v426 = vpop.f32.mrf.mxu0
  %v427 = vadd.f32 %v294, %v426
  %v428 = vpop.f32.mrf.mxu0
  %v429 = vadd.f32 %v294, %v428
  %430 = vmatmul.bf16.gmra.mxu0 %v256
  %v431 = vpop.f32.mrf.mxu0
  %v432 = vadd.f32 %v294, %v431
  %v433 = vpop.f32.mrf.mxu0
  %v434 = vadd.f32 %v294, %v433
  %435 = vmatmul.bf16.gmra.mxu0 %v258
  %v436 = vpop.f32.mrf.mxu0
  %v437 = vadd.f32 %v294, %v436
  %v438 = vpop.f32.mrf.mxu0
  %v439 = vadd.f32 %v294, %v438
  %440 = vdwg.mxu0
  %441 = vmatpush.bf16.msra.mxu0 %v375
  %442 = vmatpush.bf16.msra.mxu0 %v374
  %443 = vmatpush.bf16.msra.mxu0 %v373
  %444 = vmatpush.bf16.msra.mxu0 %v372
  %445 = vmatpush.bf16.msra.mxu0 %v371
  %446 = vmatpush.bf16.msra.mxu0 %v370
  %447 = vmatpush.bf16.msra.mxu0 %v369
  %448 = vmatpush.bf16.msra.mxu0 %v368
  %449 = vmatmul.bf16.gmra.mxu0 %v245
  %v450 = vpop.f32.mrf.mxu0
  %v451 = vadd.f32 %v402, %v450
  %v452 = vpop.f32.mrf.mxu0
  %v453 = vadd.f32 %v404, %v452
  %454 = vmatmul.bf16.gmra.mxu0 %v247
  %v455 = vpop.f32.mrf.mxu0
  %v456 = vadd.f32 %v407, %v455
  %v457 = vpop.f32.mrf.mxu0
  %v458 = vadd.f32 %v409, %v457
  %459 = vmatmul.bf16.gmra.mxu0 %v249
  %v460 = vpop.f32.mrf.mxu0
  %v461 = vadd.f32 %v412, %v460
  %v462 = vpop.f32.mrf.mxu0
  %v463 = vadd.f32 %v414, %v462
  %464 = vmatmul.bf16.gmra.mxu0 %v251
  %v465 = vpop.f32.mrf.mxu0
  %v466 = vadd.f32 %v417, %v465
  %v467 = vpop.f32.mrf.mxu0
  %v468 = vadd.f32 %v419, %v467
  %469 = vmatmul.bf16.gmra.mxu0 %v253
  %v470 = vpop.f32.mrf.mxu0
  %v471 = vadd.f32 %v422, %v470
  %v472 = vpop.f32.mrf.mxu0
  %v473 = vadd.f32 %v424, %v472
  %474 = vmatmul.bf16.gmra.mxu0 %v255
  %v475 = vpop.f32.mrf.mxu0
  %v476 = vadd.f32 %v427, %v475
  %v477 = vpop.f32.mrf.mxu0
  %v478 = vadd.f32 %v429, %v477
  %479 = vmatmul.bf16.gmra.mxu0 %v257
  %v480 = vpop.f32.mrf.mxu0
  %v481 = vadd.f32 %v432, %v480
  %v482 = vpop.f32.mrf.mxu0
  %v483 = vadd.f32 %v434, %v482
  %484 = vmatmul.bf16.gmra.mxu0 %v259
  %v485 = vpop.f32.mrf.mxu0
  %v486 = vadd.f32 %v437, %v485
  %v487 = vpop.f32.mrf.mxu0
  %v488 = vadd.f32 %v439, %v487
  %489 = vdwg.mxu0
  %v490 = vmax.f32 %v451, 0.0
  %v491 = vmax.f32 %v453, 0.0
  %v492 = vmax.f32 %v456, 0.0
  %v493 = vmax.f32 %v458, 0.0
  %v494 = vmax.f32 %v461, 0.0
  %v495 = vmax.f32 %v463, 0.0
  %v496 = vmax.f32 %v466, 0.0
  %v497 = vmax.f32 %v468, 0.0
  %v498 = vmax.f32 %v471, 0.0
  %v499 = vmax.f32 %v473, 0.0
  %v500 = vmax.f32 %v476, 0.0
  %v501 = vmax.f32 %v478, 0.0
  %v502 = vmax.f32 %v481, 0.0
  %v503 = vmax.f32 %v483, 0.0
  %v504 = vmax.f32 %v486, 0.0
  %v505 = vmax.f32 %v488, 0.0
  %v506 = vpack.c.bf16 %v491, %v490
  %v507 = vpack.c.bf16 %v493, %v492
  %v508 = vpack.c.bf16 %v495, %v494
  %v509 = vpack.c.bf16 %v497, %v496
  %v510 = vpack.c.bf16 %v499, %v498
  %v511 = vpack.c.bf16 %v501, %v500
  %v512 = vpack.c.bf16 %v503, %v502
  %v513 = vpack.c.bf16 %v505, %v504
  %v514 = vld [vmem:[%s5] sm:$0xf]
  %v515 = vld [vmem:[%s5 + $0x4] sm:$0xf]
  %v516 = vld [vmem:[%s5 + $0x8] sm:$0xf]
  %v517 = vld [vmem:[%s5 + $0xc] sm:$0xf]
  %v518 = vld [vmem:[%s5 + $0x10] sm:$0xf]
  %v519 = vld [vmem:[%s5 + $0x14] sm:$0xf]
  %v520 = vld [vmem:[%s5 + $0x18] sm:$0xf]
  %v521 = vld [vmem:[%s5 + $0x1c] sm:$0xf]
  %v522 = vld [vmem:[%s5 + $0x20] sm:$0xf]
  %v523 = vld [vmem:[%s5 + $0x24] sm:$0xf]
  %v524 = vld [vmem:[%s5 + $0x28] sm:$0xf]
  %v525 = vld [vmem:[%s5 + $0x2c] sm:$0xf]
  %v526 = vld [vmem:[%s5 + $0x30] sm:$0xf]
  %v527 = vld [vmem:[%s5 + $0x34] sm:$0xf]
  %v528 = vld [vmem:[%s5 + $0x38] sm:$0xf]
  %v529 = vld [vmem:[%s5 + $0x3c] sm:$0xf]
  %v530 = vld [vmem:[%s6] sm:$0x1]
  %v532 = vperm.slane %v530, 0
  %v550 = vunpack.c.l.b16 %v514
  %v551 = vunpack.c.l.b16 %v515
  %v552 = vunpack.c.l.b16 %v516
  %v553 = vunpack.c.l.b16 %v517
  %v554 = vunpack.c.l.b16 %v518
  %v555 = vunpack.c.l.b16 %v519
  %v556 = vunpack.c.l.b16 %v520
  %v557 = vunpack.c.l.b16 %v521
  %v558 = vunpack.c.l.b16 %v522
  %v559 = vunpack.c.l.b16 %v523
  %v560 = vunpack.c.l.b16 %v524
  %v561 = vunpack.c.l.b16 %v525
  %v562 = vunpack.c.l.b16 %v526
  %v563 = vunpack.c.l.b16 %v527
  %v564 = vunpack.c.l.b16 %v528
  %v565 = vunpack.c.l.b16 %v529
  %v566 = vpack.c.b16 %v551, %v550
  %v567 = vpack.c.b16 %v553, %v552
  %v568 = vpack.c.b16 %v555, %v554
  %v569 = vpack.c.b16 %v557, %v556
  %v570 = vpack.c.b16 %v559, %v558
  %v571 = vpack.c.b16 %v561, %v560
  %v572 = vpack.c.b16 %v563, %v562
  %v573 = vpack.c.b16 %v565, %v564
  %582 = vmatpush.bf16.msra.mxu0 %v573
  %583 = vmatpush.bf16.msra.mxu0 %v572
  %584 = vmatpush.bf16.msra.mxu0 %v571
  %585 = vmatpush.bf16.msra.mxu0 %v570
  %586 = vmatpush.bf16.msra.mxu0 %v569
  %587 = vmatpush.bf16.msra.mxu0 %v568
  %588 = vmatpush.bf16.msra.mxu0 %v567
  %589 = vmatpush.bf16.msra.mxu0 %v566
  %590 = vmatmul.bf16.gmra.mxu0 %v506
  %v591 = vpop.f32.mrf.mxu0
  %v592 = vadd.f32 %v532, %v591
  %v593 = vpop.f32.mrf.mxu0
  %v594 = vadd.f32 %v532, %v593
  %595 = vmatmul.bf16.gmra.mxu0 %v507
  %v596 = vpop.f32.mrf.mxu0
  %v597 = vadd.f32 %v532, %v596
  %v598 = vpop.f32.mrf.mxu0
  %v599 = vadd.f32 %v532, %v598
  %600 = vmatmul.bf16.gmra.mxu0 %v508
  %v601 = vpop.f32.mrf.mxu0
  %v602 = vadd.f32 %v532, %v601
  %v603 = vpop.f32.mrf.mxu0
  %v604 = vadd.f32 %v532, %v603
  %605 = vmatmul.bf16.gmra.mxu0 %v509
  %v606 = vpop.f32.mrf.mxu0
  %v607 = vadd.f32 %v532, %v606
  %v608 = vpop.f32.mrf.mxu0
  %v609 = vadd.f32 %v532, %v608
  %610 = vmatmul.bf16.gmra.mxu0 %v510
  %v611 = vpop.f32.mrf.mxu0
  %v612 = vadd.f32 %v532, %v611
  %v613 = vpop.f32.mrf.mxu0
  %v614 = vadd.f32 %v532, %v613
  %615 = vmatmul.bf16.gmra.mxu0 %v511
  %v616 = vpop.f32.mrf.mxu0
  %v617 = vadd.f32 %v532, %v616
  %v618 = vpop.f32.mrf.mxu0
  %v619 = vadd.f32 %v532, %v618
  %620 = vmatmul.bf16.gmra.mxu0 %v512
  %v621 = vpop.f32.mrf.mxu0
  %v622 = vadd.f32 %v532, %v621
  %v623 = vpop.f32.mrf.mxu0
  %v624 = vadd.f32 %v532, %v623
  %625 = vmatmul.bf16.gmra.mxu0 %v513
  %v626 = vpop.f32.mrf.mxu0
  %v627 = vadd.f32 %v532, %v626
  %v628 = vpop.f32.mrf.mxu0
  %v629 = vadd.f32 %v532, %v628
  %630 = vdwg.mxu0
  %v631 = vmax.f32 %v592, 0.0
  %v632 = vmax.f32 %v594, 0.0
  %v633 = vmax.f32 %v597, 0.0
  %v634 = vmax.f32 %v599, 0.0
  %v635 = vmax.f32 %v602, 0.0
  %v636 = vmax.f32 %v604, 0.0
  %v637 = vmax.f32 %v607, 0.0
  %v638 = vmax.f32 %v609, 0.0
  %v639 = vmax.f32 %v612, 0.0
  %v640 = vmax.f32 %v614, 0.0
  %v641 = vmax.f32 %v617, 0.0
  %v642 = vmax.f32 %v619, 0.0
  %v643 = vmax.f32 %v622, 0.0
  %v644 = vmax.f32 %v624, 0.0
  %v645 = vmax.f32 %v627, 0.0
  %v646 = vmax.f32 %v629, 0.0
  %v647 = vpack.c.bf16 %v632, %v631
  %v648 = vpack.c.bf16 %v634, %v633
  %v649 = vpack.c.bf16 %v636, %v635
  %v650 = vpack.c.bf16 %v638, %v637
  %v651 = vpack.c.bf16 %v640, %v639
  %v652 = vpack.c.bf16 %v642, %v641
  %v653 = vpack.c.bf16 %v644, %v643
  %v654 = vpack.c.bf16 %v646, %v645
  %v655 = vld [vmem:[%s7] sm:$0xf]
  %vm656 = vcmask 523264
  %v658 = vsel %vm656, %v655, 0
  %v661 = vsel %vm656, %v647, 0
  %v664 = vsel %vm656, %v648, 0
  %v667 = vsel %vm656, %v649, 0
  %v670 = vsel %vm656, %v650, 0
  %v673 = vsel %vm656, %v651, 0
  %v676 = vsel %vm656, %v652, 0
  %v679 = vsel %vm656, %v653, 0
  %v682 = vsel %vm656, %v654, 0
  %684 = vmatpush.bf16.xpose.msra.mxu0 %v682
  %685 = vmatpush.bf16.xpose.msra.mxu0 %v679
  %686 = vmatpush.bf16.xpose.msra.mxu0 %v676
  %687 = vmatpush.bf16.xpose.msra.mxu0 %v673
  %688 = vmatpush.bf16.xpose.msra.mxu0 %v670
  %689 = vmatpush.bf16.xpose.msra.mxu0 %v667
  %690 = vmatpush.bf16.xpose.msra.mxu0 %v664
  %691 = vmatpush.bf16.xpose.msra.mxu0 %v661
  %692 = vmatmul.bf16.gmra.mxu0 %v658
  %v693 = vpop.f32.mrf.mxu0
  %v694 = vadd.f32 0.0, %v693
  %v695 = vpop.f32.mrf.mxu0
  %696 = vdwg.mxu0
  %v697 = vld [vmem:[#allocation2] sm:$0x1]
  %699 = vset.pattern.permute.xlu0 0
  %700 = vperm.xlu0 %699, %v697
  %v701 = vpop.permute.xlu0 %700
  %v703 = vperm.slane %v701, 0
  %v704 = vadd.f32 %v694, %v703
  %705 = vst [vmem:[%s9] sm:$0x1] %v704
  // Predicated region
  $region38: #{_forward.1} parent=0 // pred_check
    _
  $region39: #{_forward.1} parent=0 // pred_check_branch
    %707 = sbr.rel (0) target = $region41
  $region40: #{_forward.1} parent=0 // pred_region
    _
  $region41: #{_forward.1} parent=0 // pred_fallthru
    _
  // Predicated region
  $region42: #{_forward.1} parent=0 // pred_check
    _
  $region43: #{_forward.1} parent=0 // pred_check_branch
    %709 = sbr.rel (0) target = $region45
  $region44: #{_forward.1} parent=0 // pred_region
    _
  $region45: #{_forward.1} parent=0 // pred_fallthru
    _

</llo_original>
